<compile_context>
chip_gen: v7x
topology: tpu7x:2x2x1
jax: 0.10.0
libtpu: 0.0.40
codegen_flags: <defaults>
</compile_context>

<pallas_src>
import functools
import math

import numpy as np
import jax
import jax.numpy as jnp
from jax import lax
from jax.experimental import pallas as pl
from jax.experimental.pallas import tpu as pltpu

_MIB = 1 << 20


# ---------------------------------------------------------------------------
# helpers
# ---------------------------------------------------------------------------

def _round_up(x, k):
    return (x + k - 1) // k * k


def _tpu_info():
    """(vmem_capacity_bytes, tensorcores_per_chip) with conservative fallbacks."""
    vmem, cores = 64 * _MIB, 1
    try:
        info = pltpu.get_tpu_info()
        vmem = int(getattr(info, "vmem_capacity_bytes", vmem))
        for attr in ("num_cores", "tensorcores_per_chip", "core_count"):
            c = getattr(info, attr, None)
            if c:
                cores = int(c)
                break
    except Exception:
        pass
    return vmem, cores


def _k1_footprint(tm, m_pad, d):
    """Per-step VMEM bytes for kernel 1 (double-buffered blocks + f32 temps)."""
    return (2 * tm * m_pad * 2        # bf16 out block, double-buffered
            + 2 * tm * d * 4          # f32 lhs block, double-buffered
            + 2 * d * m_pad * 4       # f32 resident rhs (still 2 buffers)
            + 2 * tm * m_pad * 4)     # f32 sim/mask temporaries (slack)


def _pick_row_tile(m_pad, d, vmem_budget, prefer_multi_step):
    """Largest row tile that fits the VMEM budget; on multi-TC chips prefer
    >=2 grid steps so the 'parallel' axis can be sharded across cores."""
    cands = [t for t in (1024, 512, 256, 128) if t <= m_pad and m_pad % t == 0]
    if not cands:
        return m_pad
    fitting = [t for t in cands if _k1_footprint(t, m_pad, d) <= vmem_budget]
    fitting = fitting or [cands[-1]]
    best = fitting[0]
    if prefer_multi_step and m_pad // best < 2:
        for t in fitting:
            if m_pad // t >= 2:
                return t
    return best


# Abramowitz & Stegun 4.4.46 polynomial for arccos on [0, 1], |err| ~ 2e-8.
_ACOS_COEFFS = (-0.0012624911, 0.0066700901, -0.0170881256, 0.0308918810,
                -0.0501743046, 0.0889789874, -0.2145988016, 1.5707963050)


def _acos_poly(x):
    """arccos(x), x in [-1, 1]: sqrt(1-|x|) * P(|x|), reflected for x < 0."""
    ax = jnp.abs(x)
    p = _ACOS_COEFFS[0]
    for c in _ACOS_COEFFS[1:]:
        p = p * ax + c
    r = jnp.sqrt(jnp.maximum(1.0 - ax, 0.0)) * p
    return jnp.where(x >= 0.0, r, math.pi - r)


# ---------------------------------------------------------------------------
# Kernel 1: cosine gram -> arccos -> angular sim -> in-kernel mask ->
#           row degrees -> row-normalized bf16 A  (+ f32 dinv vector)
# ---------------------------------------------------------------------------

def _adj_kernel(fr_ref, fct_ref, kac_ref, kar_ref, kbc_ref, kbr_ref,
                a_ref, dinv_ref):
    # Gram matmul stays f32: arccos is ill-conditioned near |x|=1 and the
    # always-masked-in self-edges sit there.  Features are pre-row-normalized
    # in the glue, so this dot IS the cosine similarity.
    c = jnp.dot(fr_ref[...], fct_ref[...], preferred_element_type=jnp.float32)
    c = jnp.clip(0.99999 * c, -0.99999, 0.99999)        # guard arccos domain
    sim = 1.0 - _acos_poly(c) * (1.0 / math.pi)
    # Block-structure mask generated in-kernel from per-node int32 keys
    # (no (M, M) f32 mask streamed from HBM):
    #   edge iff same (dialogue, modality) block OR same utterance.
    mask = (kac_ref[...] == kar_ref[...]) | (kbc_ref[...] == kbr_ref[...])
    a = jnp.where(mask, sim, 0.0)
    # Exact f32 row degrees BEFORE the bf16 cast (A symmetric -> cols == rows).
    deg = jnp.sum(a, axis=1, keepdims=True)
    dinv = jnp.where(deg > 0.0, lax.rsqrt(deg), 0.0)    # pad rows -> exactly 0
    dinv_ref[...] = dinv
    a_ref[...] = (dinv * a).astype(jnp.bfloat16)        # row-normalized, bf16


def build_adjacency(featsN_pad, keys):
    kac, kar, kbc, kbr = keys
    m_pad, d = featsN_pad.shape
    vmem_cap, cores = _tpu_info()
    budget = min(vmem_cap, 64 * _MIB) - 8 * _MIB
    tm = _pick_row_tile(m_pad, d, budget, prefer_multi_step=cores > 1)
    vmem_limit = int(min(max(_k1_footprint(tm, m_pad, d) + 8 * _MIB, 32 * _MIB),
                         min(vmem_cap, 100 * _MIB)))
    feats_t = featsN_pad.T                               # (d, M) MXU-native RHS
    return pl.pallas_call(
        _adj_kernel,
        out_shape=(jax.ShapeDtypeStruct((m_pad, m_pad), jnp.bfloat16),
                   jax.ShapeDtypeStruct((m_pad, 1), jnp.float32)),
        grid=(m_pad // tm,),
        in_specs=[pl.BlockSpec((tm, d), lambda i: (i, 0)),
                  pl.BlockSpec((d, m_pad), lambda i: (0, 0)),
                  pl.BlockSpec((tm, 1), lambda i: (i, 0)),
                  pl.BlockSpec((1, m_pad), lambda i: (0, 0)),
                  pl.BlockSpec((tm, 1), lambda i: (i, 0)),
                  pl.BlockSpec((1, m_pad), lambda i: (0, 0))],
        out_specs=(pl.BlockSpec((tm, m_pad), lambda i: (i, 0)),
                   pl.BlockSpec((tm, 1), lambda i: (i, 0))),
        compiler_params=pltpu.CompilerParams(
            dimension_semantics=("parallel",),
            vmem_limit_bytes=vmem_limit),
    )(featsN_pad, feats_t, kac, kar, kbc, kbr)


# ---------------------------------------------------------------------------
# Kernel 2: fused GCNII stack (fc0 + per-layer column normalization + layers)
# ---------------------------------------------------------------------------

def _gcn_stack_kernel(a_hbm_ref, x_ref, dinv_ref, w0t_ref, b0_ref, ws_ref,
                      o_ref, a_vmem, dma_sem, *, alpha, lamda, nlayers):
    # Single-buffered DMA of the bf16 row-normalized adjacency (grid=(1,): the
    # default double-buffering would only double the dominant VMEM allocation);
    # the copy is overlapped with fc0, which does not need A.
    cp = pltpu.make_async_copy(a_hbm_ref, a_vmem, dma_sem)
    cp.start()

    # fc0: relu(x @ W0^T + b)   (W0 pre-transposed & lane-padded to NH)
    h0 = jnp.maximum(
        jnp.dot(x_ref[...].astype(jnp.bfloat16), w0t_ref[...],
                preferred_element_type=jnp.float32) + b0_ref[...], 0.0)
    dinv = dinv_ref[...]                                 # (M, 1) column-side D^-1/2

    cp.wait()
    a_bf = a_vmem[...]                                   # (M, M) bf16, row-normalized

    # D^-1/2 A D^-1/2 h == (dinv*A) @ (dinv*h); row side is baked into a_bf.
    h = h0
    # TODO(synk): for large nlayers switch to lax.fori_loop with dynamic
    # ws_ref[i] indexing and an SMEM theta table; static unroll is fine here.
    for i in range(nlayers):
        theta = math.log(lamda / (i + 1) + 1.0)
        hs = (dinv * h).astype(jnp.bfloat16)             # column-side normalization
        hi = jnp.dot(a_bf, hs, preferred_element_type=jnp.float32)
        support = (1.0 - alpha) * hi + alpha * h0
        out = theta * jnp.dot(support.astype(jnp.bfloat16), ws_ref[i],
                              preferred_element_type=jnp.float32) \
            + (1.0 - theta) * support
        h = jnp.maximum(out, 0.0)
    o_ref[...] = h


def gcn_stack(adj_bf, feats_pad, dinv, w0t, b0, wstack, *, alpha, lamda, nlayers):
    m_pad = adj_bf.shape[0]
    d = feats_pad.shape[1]
    nh_pad = w0t.shape[1]
    vmem_cap, _ = _tpu_info()
    fp = (m_pad * m_pad * 2                    # bf16 adjacency scratch (single)
          + 2 * m_pad * d * 4                  # feats (double-buffered)
          + 2 * m_pad * nh_pad * 4             # output (double-buffered)
          + 2 * nlayers * nh_pad * nh_pad * 2  # stacked layer weights
          + 4 * m_pad * nh_pad * 4)            # h/h0/support/hs live values
    vmem_limit = int(min(max(fp + 8 * _MIB, 32 * _MIB), min(vmem_cap, 100 * _MIB)))

    kernel = functools.partial(_gcn_stack_kernel,
                               alpha=alpha, lamda=lamda, nlayers=nlayers)
    return pl.pallas_call(
        kernel,
        out_shape=jax.ShapeDtypeStruct((m_pad, nh_pad), jnp.float32),
        grid=(1,),
        in_specs=[pl.BlockSpec(memory_space=pl.ANY),           # A stays in HBM
                  pl.BlockSpec((m_pad, d), lambda i: (0, 0)),
                  pl.BlockSpec((m_pad, 1), lambda i: (0, 0)),
                  pl.BlockSpec((d, nh_pad), lambda i: (0, 0)),
                  pl.BlockSpec((1, nh_pad), lambda i: (0, 0)),
                  pl.BlockSpec((nlayers, nh_pad, nh_pad), lambda i: (0, 0, 0))],
        out_specs=pl.BlockSpec((m_pad, nh_pad), lambda i: (0, 0)),
        scratch_shapes=[pltpu.VMEM((m_pad, m_pad), jnp.bfloat16),
                        pltpu.SemaphoreType.DMA(())],
        compiler_params=pltpu.CompilerParams(
            dimension_semantics=("arbitrary",),
            vmem_limit_bytes=vmem_limit),
    )(adj_bf, feats_pad, dinv, w0t, b0, wstack)


# ---------------------------------------------------------------------------
# Glue: mask keys, parameter init, full forward
# ---------------------------------------------------------------------------

def build_mask_keys(dia_len, m_pad, modal_num=3):
    """Per-node int32 keys encoding the create_big_adj sparsity pattern.

    keyA = dialogue*modal_num + modality  (same-dialogue same-modality block)
    keyB = global utterance index         (same utterance -> cross-modal edge)
    Pad rows get mismatched negative keys so no pad edge ever matches."""
    n = int(sum(dia_len))
    m = modal_num * n
    dia_id = np.concatenate([np.full((x,), i, dtype=np.int64)
                             for i, x in enumerate(dia_len)])
    pos = np.arange(n, dtype=np.int64)
    key_a = np.tile(dia_id, modal_num) * modal_num \
        + np.repeat(np.arange(modal_num, dtype=np.int64), n)
    key_b = np.tile(pos, modal_num)
    pad_ids = np.arange(m_pad - m, dtype=np.int64)
    ka_col = np.concatenate([key_a, -1 - 4 * pad_ids])
    ka_row = np.concatenate([key_a, -2 - 4 * pad_ids])
    kb_col = np.concatenate([key_b, -3 - 4 * pad_ids])
    kb_row = np.concatenate([key_b, -4 - 4 * pad_ids])
    col = lambda k: jnp.asarray(k.reshape(m_pad, 1), jnp.int32)
    row = lambda k: jnp.asarray(k.reshape(1, m_pad), jnp.int32)
    return col(ka_col), row(ka_row), col(kb_col), row(kb_row)


def init_params(key, n_dim, nhidden, nlayers, n_speakers):
    ks = jax.random.split(key, 3 + nlayers)
    lim = 1.0 / math.sqrt(n_dim)
    stdv = 1.0 / math.sqrt(nhidden)
    return {
        "speaker_emb": jax.random.normal(ks[0], (n_speakers, n_dim), jnp.float32),
        "fc0_w": jax.random.uniform(ks[1], (nhidden, n_dim), jnp.float32, -lim, lim),
        "fc0_b": jax.random.uniform(ks[2], (nhidden,), jnp.float32, -lim, lim),
        "conv_w": [jax.random.uniform(ks[3 + i], (nhidden, nhidden),
                                      jnp.float32, -stdv, stdv)
                   for i in range(nlayers)],
    }


def mm_gcn_forward(params, a, v, l, dia_len, qmask, *, alpha, lamda, nlayers):
    n, n_dim = l.shape
    nh = params["fc0_b"].shape[0]

    # speaker embedding added to the language modality (use_speaker=True) — glue
    q = jnp.concatenate([qmask[:x, i, :] for i, x in enumerate(dia_len)], axis=0)
    spk_idx = jnp.argmax(q, axis=-1)
    l = l + params["speaker_emb"][spk_idx]

    feats = jnp.concatenate([a, v, l], axis=0)                 # (3N, n_dim)
    m = feats.shape[0]

    # lane-dense padding: node axis -> multiple of 128, hidden -> 128
    # (don't over-pad nhidden: 128 fills the MXU output tile for nhidden<=128).
    m_pad = _round_up(m, 128)
    nh_pad = _round_up(nh, 128)
    feats_pad = jnp.pad(feats, ((0, m_pad - m), (0, 0)))

    # pre-row-normalize once so the in-kernel gram matmul IS cosine similarity
    featsN = feats * lax.rsqrt(jnp.maximum(
        jnp.sum(feats * feats, axis=1, keepdims=True), 1e-12))
    featsN_pad = jnp.pad(featsN, ((0, m_pad - m), (0, 0)))

    keys = build_mask_keys(dia_len, m_pad)

    # ---- create_big_adj: cossim -> arccos -> mask -> D^-1/2-row * A (bf16) ----
    adj_bf, dinv = build_adjacency(featsN_pad, keys)           # Pallas kernel 1

    # ---- GCNII_lyc: fused fc0 + column normalization + all layers ----
    w0t = jnp.pad(params["fc0_w"].T,
                  ((0, 0), (0, nh_pad - nh))).astype(jnp.bfloat16)      # (d, NH)
    b0 = jnp.pad(params["fc0_b"], (0, nh_pad - nh)).reshape(1, nh_pad)  # (1, NH)
    wstack = jnp.pad(jnp.stack(params["conv_w"]),
                     ((0, 0), (0, nh_pad - nh), (0, nh_pad - nh))
                     ).astype(jnp.bfloat16)                              # (L, NH, NH)

    h = gcn_stack(adj_bf, feats_pad, dinv, w0t, b0, wstack,
                  alpha=alpha, lamda=lamda, nlayers=nlayers)   # Pallas kernel 2
    h = h[:m, :nh]                                             # strip padding

    gfeat = jnp.concatenate([feats, h], axis=-1)               # residue concat
    out = jnp.concatenate([gfeat[:n], gfeat[n:2 * n], gfeat[2 * n:3 * n]],
                          axis=-1)
    return out                                                 # return_feature=True


if __name__ == "__main__":
    key = jax.random.PRNGKey(0)
    n_dim, nhidden, nlayers = 32, 64, 2
    n_speakers = 2
    alpha, lamda = 0.1, 0.5
    dia_len = [9, 7]                 # N = 16 utterances, 3N = 48 graph nodes
    N = sum(dia_len)

    k1, k2, k3, k4, kp = jax.random.split(key, 5)
    a = jax.random.normal(k1, (N, n_dim), jnp.float32)
    v = jax.random.normal(k2, (N, n_dim), jnp.float32)
    l = jax.random.normal(k3, (N, n_dim), jnp.float32)
    qmask = jax.random.normal(k4, (max(dia_len), len(dia_len), n_speakers),
                              jnp.float32)

    params = init_params(kp, n_dim, nhidden, nlayers, n_speakers)
    out = mm_gcn_forward(params, a, v, l, dia_len, qmask,
                         alpha=alpha, lamda=lamda, nlayers=nlayers)
    out = jax.block_until_ready(out)

    assert out.shape == (N, 3 * (n_dim + nhidden)), out.shape
    assert bool(jnp.all(jnp.isfinite(out)))
    print("KERNEL_OK")
</pallas_src>

<mosaic_0001>
module attributes {stable_mosaic.version = 11 : i64} {
  func.func @_adj_kernel(%arg0: i32, %arg1: memref<128x32xf32, #tpu.memory_space<vmem>>, %arg2: memref<32x128xf32, #tpu.memory_space<vmem>>, %arg3: memref<128x1xi32, #tpu.memory_space<vmem>>, %arg4: memref<1x128xi32, #tpu.memory_space<vmem>>, %arg5: memref<128x1xi32, #tpu.memory_space<vmem>>, %arg6: memref<1x128xi32, #tpu.memory_space<vmem>>, %arg7: memref<128x128xbf16, #tpu.memory_space<vmem>>, %arg8: memref<128x1xf32, #tpu.memory_space<vmem>>) attributes {dimension_semantics = [#tpu.dimension_semantics<parallel>], iteration_bounds = array<i64: 1>, scalar_prefetch = 0 : i64, scratch_operands = 0 : i64, tpu.core_type = #tpu.core_type<tc>, window_params = [{transform_indices = @transform_0, window_bounds = array<i64: 128, 32>}, {pipeline_mode = #tpu.pipeline_mode<synchronous>, transform_indices = @transform_1, window_bounds = array<i64: 32, 128>}, {transform_indices = @transform_2, window_bounds = array<i64: 128, 1>}, {pipeline_mode = #tpu.pipeline_mode<synchronous>, transform_indices = @transform_3, window_bounds = array<i64: 1, 128>}, {transform_indices = @transform_4, window_bounds = array<i64: 128, 1>}, {pipeline_mode = #tpu.pipeline_mode<synchronous>, transform_indices = @transform_5, window_bounds = array<i64: 1, 128>}, {transform_indices = @transform_6, window_bounds = array<i64: 128, 128>}, {transform_indices = @transform_7, window_bounds = array<i64: 128, 1>}]} {
    %c0 = arith.constant 0 : index
    %c0_0 = arith.constant 0 : index
    %0 = vector.load %arg1[%c0, %c0_0] : memref<128x32xf32, #tpu.memory_space<vmem>>, vector<128x32xf32>
    %c0_1 = arith.constant 0 : index
    %c0_2 = arith.constant 0 : index
    %1 = vector.load %arg2[%c0_1, %c0_2] : memref<32x128xf32, #tpu.memory_space<vmem>>, vector<32x128xf32>
    %cst = arith.constant dense<0.000000e+00> : vector<128x128xf32>
    %2 = tpu.matmul %0, %1, %cst {dimension_numbers = #tpu.dot_dimension_numbers<[1], [0], [0], [1], [0, 0, 1, 1], [], []>} : vector<128x32xf32>, vector<32x128xf32>, vector<128x128xf32> -> vector<128x128xf32>
    %cst_3 = arith.constant 0.999989986 : f32
    %3 = vector.broadcast %cst_3 : f32 to vector<128x128xf32>
    %4 = arith.mulf %3, %2 : vector<128x128xf32>
    %cst_4 = arith.constant -0.999989986 : f32
    %cst_5 = arith.constant 0.999989986 : f32
    %5 = vector.broadcast %cst_4 : f32 to vector<128x128xf32>
    %6 = arith.maximumf %5, %4 : vector<128x128xf32>
    %7 = vector.broadcast %cst_5 : f32 to vector<128x128xf32>
    %8 = arith.minimumf %7, %6 : vector<128x128xf32>
    %9 = math.absf %8 : vector<128x128xf32>
    %cst_6 = arith.constant -0.0012624911 : f32
    %10 = vector.broadcast %cst_6 : f32 to vector<128x128xf32>
    %11 = arith.mulf %10, %9 : vector<128x128xf32>
    %cst_7 = arith.constant 6.670090e-03 : f32
    %12 = vector.broadcast %cst_7 : f32 to vector<128x128xf32>
    %13 = arith.addf %11, %12 : vector<128x128xf32>
    %14 = arith.mulf %13, %9 : vector<128x128xf32>
    %cst_8 = arith.constant -0.0170881264 : f32
    %15 = vector.broadcast %cst_8 : f32 to vector<128x128xf32>
    %16 = arith.addf %14, %15 : vector<128x128xf32>
    %17 = arith.mulf %16, %9 : vector<128x128xf32>
    %cst_9 = arith.constant 0.0308918804 : f32
    %18 = vector.broadcast %cst_9 : f32 to vector<128x128xf32>
    %19 = arith.addf %17, %18 : vector<128x128xf32>
    %20 = arith.mulf %19, %9 : vector<128x128xf32>
    %cst_10 = arith.constant -0.0501743034 : f32
    %21 = vector.broadcast %cst_10 : f32 to vector<128x128xf32>
    %22 = arith.addf %20, %21 : vector<128x128xf32>
    %23 = arith.mulf %22, %9 : vector<128x128xf32>
    %cst_11 = arith.constant 0.0889789909 : f32
    %24 = vector.broadcast %cst_11 : f32 to vector<128x128xf32>
    %25 = arith.addf %23, %24 : vector<128x128xf32>
    %26 = arith.mulf %25, %9 : vector<128x128xf32>
    %cst_12 = arith.constant -0.214598805 : f32
    %27 = vector.broadcast %cst_12 : f32 to vector<128x128xf32>
    %28 = arith.addf %26, %27 : vector<128x128xf32>
    %29 = arith.mulf %28, %9 : vector<128x128xf32>
    %cst_13 = arith.constant 1.57079625 : f32
    %30 = vector.broadcast %cst_13 : f32 to vector<128x128xf32>
    %31 = arith.addf %29, %30 : vector<128x128xf32>
    %cst_14 = arith.constant 1.000000e+00 : f32
    %32 = vector.broadcast %cst_14 : f32 to vector<128x128xf32>
    %33 = arith.subf %32, %9 : vector<128x128xf32>
    %cst_15 = arith.constant 0.000000e+00 : f32
    %34 = vector.broadcast %cst_15 : f32 to vector<128x128xf32>
    %35 = arith.maximumf %33, %34 : vector<128x128xf32>
    %36 = math.sqrt %35 : vector<128x128xf32>
    %37 = arith.mulf %36, %31 : vector<128x128xf32>
    %cst_16 = arith.constant 0.000000e+00 : f32
    %38 = vector.broadcast %cst_16 : f32 to vector<128x128xf32>
    %39 = arith.cmpf oge, %8, %38 : vector<128x128xf32>
    %cst_17 = arith.constant 3.14159274 : f32
    %40 = vector.broadcast %cst_17 : f32 to vector<128x128xf32>
    %41 = arith.subf %40, %37 : vector<128x128xf32>
    %42 = arith.select %39, %37, %41 : vector<128x128xi1>, vector<128x128xf32>
    %cst_18 = arith.constant 0.318309873 : f32
    %43 = vector.broadcast %cst_18 : f32 to vector<128x128xf32>
    %44 = arith.mulf %42, %43 : vector<128x128xf32>
    %cst_19 = arith.constant 1.000000e+00 : f32
    %45 = vector.broadcast %cst_19 : f32 to vector<128x128xf32>
    %46 = arith.subf %45, %44 : vector<128x128xf32>
    %c0_20 = arith.constant 0 : index
    %c0_21 = arith.constant 0 : index
    %47 = vector.load %arg3[%c0_20, %c0_21] : memref<128x1xi32, #tpu.memory_space<vmem>>, vector<128x1xi32>
    %c0_22 = arith.constant 0 : index
    %c0_23 = arith.constant 0 : index
    %48 = vector.load %arg4[%c0_22, %c0_23] : memref<1x128xi32, #tpu.memory_space<vmem>>, vector<1x128xi32>
    %49 = vector.broadcast %47 : vector<128x1xi32> to vector<128x128xi32>
    %50 = vector.broadcast %48 : vector<1x128xi32> to vector<128x128xi32>
    %51 = arith.cmpi eq, %49, %50 : vector<128x128xi32>
    %c0_24 = arith.constant 0 : index
    %c0_25 = arith.constant 0 : index
    %52 = vector.load %arg5[%c0_24, %c0_25] : memref<128x1xi32, #tpu.memory_space<vmem>>, vector<128x1xi32>
    %c0_26 = arith.constant 0 : index
    %c0_27 = arith.constant 0 : index
    %53 = vector.load %arg6[%c0_26, %c0_27] : memref<1x128xi32, #tpu.memory_space<vmem>>, vector<1x128xi32>
    %54 = vector.broadcast %52 : vector<128x1xi32> to vector<128x128xi32>
    %55 = vector.broadcast %53 : vector<1x128xi32> to vector<128x128xi32>
    %56 = arith.cmpi eq, %54, %55 : vector<128x128xi32>
    %57 = arith.ori %51, %56 : vector<128x128xi1>
    %cst_28 = arith.constant 0.000000e+00 : f32
    %58 = vector.broadcast %cst_28 : f32 to vector<128x128xf32>
    %59 = arith.select %57, %46, %58 : vector<128x128xi1>, vector<128x128xf32>
    %cst_29 = arith.constant dense<0.000000e+00> : vector<128xf32>
    %60 = vector.multi_reduction <add>, %59, %cst_29 [1] : vector<128x128xf32> to vector<128xf32>
    %61 = vector.shape_cast %60 : vector<128xf32> to vector<128x1xf32>
    %cst_30 = arith.constant 0.000000e+00 : f32
    %62 = vector.broadcast %cst_30 : f32 to vector<128x1xf32>
    %63 = arith.cmpf ogt, %61, %62 : vector<128x1xf32>
    %64 = math.rsqrt %61 : vector<128x1xf32>
    %cst_31 = arith.constant 0.000000e+00 : f32
    %65 = vector.broadcast %cst_31 : f32 to vector<128x1xf32>
    %66 = arith.select %63, %64, %65 : vector<128x1xi1>, vector<128x1xf32>
    %c0_32 = arith.constant 0 : index
    %c0_33 = arith.constant 0 : index
    %67 = vector.load %arg8[%c0_32, %c0_33] : memref<128x1xf32, #tpu.memory_space<vmem>>, vector<128x1xf32>
    tpu.vector_store %arg8[%c0_32, %c0_33], %66 {strides = array<i32>} : memref<128x1xf32, #tpu.memory_space<vmem>>, vector<128x1xf32>,
    %68 = vector.broadcast %66 : vector<128x1xf32> to vector<128x128xf32>
    %69 = arith.mulf %68, %59 : vector<128x128xf32>
    %70 = arith.truncf %69 : vector<128x128xf32> to vector<128x128xbf16>
    %c0_34 = arith.constant 0 : index
    %c0_35 = arith.constant 0 : index
    %71 = vector.load %arg7[%c0_34, %c0_35] : memref<128x128xbf16, #tpu.memory_space<vmem>>, vector<128x128xbf16>
    tpu.vector_store %arg7[%c0_34, %c0_35], %70 {strides = array<i32>} : memref<128x128xbf16, #tpu.memory_space<vmem>>, vector<128x128xbf16>,
    return
  }
  func.func @transform_0(%arg0: i32) -> (i32, i32) {
    %c0_i32 = arith.constant 0 : i32
    %c0_i32_0 = arith.constant 0 : i32
    return %arg0, %c0_i32 : i32, i32
  }
  func.func @transform_1(%arg0: i32) -> (i32, i32) {
    %c0_i32 = arith.constant 0 : i32
    %c0_i32_0 = arith.constant 0 : i32
    %c0_i32_1 = arith.constant 0 : i32
    return %c0_i32, %c0_i32_0 : i32, i32
  }
  func.func @transform_2(%arg0: i32) -> (i32, i32) {
    %c0_i32 = arith.constant 0 : i32
    %c0_i32_0 = arith.constant 0 : i32
    return %arg0, %c0_i32 : i32, i32
  }
  func.func @transform_3(%arg0: i32) -> (i32, i32) {
    %c0_i32 = arith.constant 0 : i32
    %c0_i32_0 = arith.constant 0 : i32
    %c0_i32_1 = arith.constant 0 : i32
    return %c0_i32, %c0_i32_0 : i32, i32
  }
  func.func @transform_4(%arg0: i32) -> (i32, i32) {
    %c0_i32 = arith.constant 0 : i32
    %c0_i32_0 = arith.constant 0 : i32
    return %arg0, %c0_i32 : i32, i32
  }
  func.func @transform_5(%arg0: i32) -> (i32, i32) {
    %c0_i32 = arith.constant 0 : i32
    %c0_i32_0 = arith.constant 0 : i32
    %c0_i32_1 = arith.constant 0 : i32
    return %c0_i32, %c0_i32_0 : i32, i32
  }
  func.func @transform_6(%arg0: i32) -> (i32, i32) {
    %c0_i32 = arith.constant 0 : i32
    %c0_i32_0 = arith.constant 0 : i32
    return %arg0, %c0_i32 : i32, i32
  }
  func.func @transform_7(%arg0: i32) -> (i32, i32) {
    %c0_i32 = arith.constant 0 : i32
    %c0_i32_0 = arith.constant 0 : i32
    return %arg0, %c0_i32 : i32, i32
  }
}

</mosaic_0001>

<llo_original>
// kernel: tpu_custom_call.1
$region0: #{tpu_custom_call.1}
  #allocation0 [shape = 'u32[]', space=smem, size = 0x4, offset = 0x4, fixed_abs, tag = 'smem constant byte address 0x4 - core index']
  #allocation1 [shape = 'u32[144,128]{1,0:T(1,128)}', space=vmem, size = 0x12000, scoped, tag = 'internal scratch']
  %s0 = inlined_call_operand.vmem [shape: f32[128,32], index: 0, kind: input, shape index: {}]
  %s1 = inlined_call_operand.vmem [shape: f32[32,128], index: 1, kind: input, shape index: {}]
  %s2 = inlined_call_operand.vmem [shape: s32[128,1], index: 2, kind: input, shape index: {}]
  %s3 = inlined_call_operand.vmem [shape: s32[1,128], index: 3, kind: input, shape index: {}]
  %s4 = inlined_call_operand.vmem [shape: s32[128,1], index: 4, kind: input, shape index: {}]
  %s5 = inlined_call_operand.vmem [shape: s32[1,128], index: 5, kind: input, shape index: {}]
  %s6 = inlined_call_operand.hbm [shape: bf16[128,128], index: 6, kind: output, shape index: {0}]
  %s7 = inlined_call_operand.vmem [shape: f32[128,1], index: 7, kind: output, shape index: {1}]
  %8 = xla_tuple %s6, %s7
  %s9 = sld [smem:[#allocation0]]
  $region42: #{tpu_custom_call.1} parent=0
    _
  %s11 = ssub.s32 1, %s9
  %s12 = scalar_select 0, %s11, %s9
  $region1: #{tpu_custom_call.1} parent=0
    #allocation2 [shape = 'u8[32768]{0}', space=vmem, size = 0x8000, scoped, tag = 'output window, operand 0, single buffered']
    #allocation3 [shape = 's32[1]{0}', space=sflag, size = 0x4, scoped, tag = 'scoped memory for tpu_custom_call.1']
    %13 = vsyncpa [#allocation3], 0
    // Predicated region
    $region2: #{tpu_custom_call.1} parent=1 // pred_check
      _
    $region3: #{tpu_custom_call.1} parent=1 // pred_check_branch
      %15 = sbr.rel (0) target = $region5
    $region4: #{tpu_custom_call.1} parent=1 // pred_region
      _
    $region5: #{tpu_custom_call.1} parent=1 // pred_fallthru
      _
    // Predicated region
    $region6: #{tpu_custom_call.1} parent=1 // pred_check
      _
    $region7: #{tpu_custom_call.1} parent=1 // pred_check_branch
      %17 = sbr.rel (0) target = $region9
    $region8: #{tpu_custom_call.1} parent=1 // pred_region
      _
    $region9: #{tpu_custom_call.1} parent=1 // pred_fallthru
      _
    // Predicated region
    $region10: #{tpu_custom_call.1} parent=1 // pred_check
      _
    $region11: #{tpu_custom_call.1} parent=1 // pred_check_branch
      %19 = sbr.rel (0) target = $region13
    $region12: #{tpu_custom_call.1} parent=1 // pred_region
      _
    $region13: #{tpu_custom_call.1} parent=1 // pred_fallthru
      _
    // Predicated region
    $region14: #{tpu_custom_call.1} parent=1 // pred_check
      _
    $region15: #{tpu_custom_call.1} parent=1 // pred_check_branch
      %21 = sbr.rel (0) target = $region17
    $region16: #{tpu_custom_call.1} parent=1 // pred_region
      _
    $region17: #{tpu_custom_call.1} parent=1 // pred_fallthru
      _
    // Predicated region
    $region18: #{tpu_custom_call.1} parent=1 // pred_check
      _
    $region19: #{tpu_custom_call.1} parent=1 // pred_check_branch
      %23 = sbr.rel (0) target = $region21
    $region20: #{tpu_custom_call.1} parent=1 // pred_region
      _
    $region21: #{tpu_custom_call.1} parent=1 // pred_fallthru
      _
    // Predicated region
    $region22: #{tpu_custom_call.1} parent=1 // pred_check
      _
    $region23: #{tpu_custom_call.1} parent=1 // pred_check_branch
      %25 = sbr.rel (0) target = $region25
    $region24: #{tpu_custom_call.1} parent=1 // pred_region
      _
    $region25: #{tpu_custom_call.1} parent=1 // pred_fallthru
      _
    %v26 = vld [vmem:[%s0] sm:$0xff]
    %v27 = vld [vmem:[%s0 + $0x8] sm:$0xff]
    %v28 = vld [vmem:[%s0 + $0x10] sm:$0xff]
    %v29 = vld [vmem:[%s0 + $0x18] sm:$0xff]
    %v30 = vld [vmem:[%s0 + $0x20] sm:$0xff]
    %v31 = vld [vmem:[%s0 + $0x28] sm:$0xff]
    %v32 = vld [vmem:[%s0 + $0x30] sm:$0xff]
    %v33 = vld [vmem:[%s0 + $0x38] sm:$0xff]
    %v34 = vld [vmem:[%s0 + $0x40] sm:$0xff]
    %v35 = vld [vmem:[%s0 + $0x48] sm:$0xff]
    %v36 = vld [vmem:[%s0 + $0x50] sm:$0xff]
    %v37 = vld [vmem:[%s0 + $0x58] sm:$0xff]
    %v38 = vld [vmem:[%s0 + $0x60] sm:$0xff]
    %v39 = vld [vmem:[%s0 + $0x68] sm:$0xff]
    %v40 = vld [vmem:[%s0 + $0x70] sm:$0xff]
    %v41 = vld [vmem:[%s0 + $0x78] sm:$0xff]
    %v42 = vld [vmem:[%s1] sm:$0xff]
    %v43 = vld [vmem:[%s1 + $0x8] sm:$0xff]
    %v44 = vld [vmem:[%s1 + $0x10] sm:$0xff]
    %v45 = vld [vmem:[%s1 + $0x18] sm:$0xff]
    %vm46 = vcmask 261120
    %v48 = vsel %vm46, %v26, 0
    %v51 = vsel %vm46, %v27, 0
    %v54 = vsel %vm46, %v28, 0
    %v57 = vsel %vm46, %v29, 0
    %v60 = vsel %vm46, %v30, 0
    %v63 = vsel %vm46, %v31, 0
    %v66 = vsel %vm46, %v32, 0
    %v69 = vsel %vm46, %v33, 0
    %v72 = vsel %vm46, %v34, 0
    %v75 = vsel %vm46, %v35, 0
    %v78 = vsel %vm46, %v36, 0
    %v81 = vsel %vm46, %v37, 0
    %v84 = vsel %vm46, %v38, 0
    %v87 = vsel %vm46, %v39, 0
    %v90 = vsel %vm46, %v40, 0
    %v93 = vsel %vm46, %v41, 0
    %95 = vmatprep.subr.mxu0 0.0
    %96 = vmatpush1.msra.mxu0 %v42
    %97 = vmatprep.subr.mxu0 0.0
    %98 = vmatpush1.msra.mxu0 %v43
    %99 = vmatprep.subr.mxu0 0.0
    %100 = vmatpush1.msra.mxu0 %v44
    %101 = vmatprep.subr.mxu0 0.0
    %102 = vmatpush1.msra.mxu0 %v45
    %103 = vmatprep.subr.mxu0 0.0
    %104 = vmatpush1.msra.mxu0 0.0
    %105 = vmatprep.subr.mxu0 0.0
    %106 = vmatpush1.msra.mxu0 0.0
    %107 = vmatprep.subr.mxu0 0.0
    %108 = vmatpush1.msra.mxu0 0.0
    %109 = vmatprep.subr.mxu0 0.0
    %110 = vmatpush1.msra.mxu0 0.0
    %111 = vmatprep.subr.mxu0 0.0
    %112 = vmatpush1.msra.mxu0 0.0
    %113 = vmatprep.subr.mxu0 0.0
    %114 = vmatpush1.msra.mxu0 0.0
    %115 = vmatprep.subr.mxu0 0.0
    %116 = vmatpush1.msra.mxu0 0.0
    %117 = vmatprep.subr.mxu0 0.0
    %118 = vmatpush1.msra.mxu0 0.0
    %119 = vmatprep.subr.mxu0 0.0
    %120 = vmatpush1.msra.mxu0 0.0
    %121 = vmatprep.subr.mxu0 0.0
    %122 = vmatpush1.msra.mxu0 0.0
    %123 = vmatprep.subr.mxu0 0.0
    %124 = vmatpush1.msra.mxu0 0.0
    %125 = vmatprep.subr.mxu0 0.0
    %126 = vmatpush1.msra.mxu0 0.0
    %127 = vmatprep.subr.mxu0 0.0
    %128 = vmatpush1.msra.mxu0 0.0
    %129 = vmatprep.subr.mxu0 0.0
    %130 = vmatpush1.msra.mxu0 0.0
    %131 = vmatprep.subr.mxu0 0.0
    %132 = vmatpush1.msra.mxu0 0.0
    %133 = vmatprep.subr.mxu0 0.0
    %134 = vmatpush1.msra.mxu0 0.0
    %135 = vmatprep.subr.mxu0 0.0
    %136 = vmatpush1.msra.mxu0 0.0
    %137 = vmatprep.subr.mxu0 0.0
    %138 = vmatpush1.msra.mxu0 0.0
    %139 = vmatprep.subr.mxu0 0.0
    %140 = vmatpush1.msra.mxu0 0.0
    %141 = vmatprep.subr.mxu0 0.0
    %142 = vmatpush1.msra.mxu0 0.0
    %143 = vmatprep.subr.mxu0 0.0
    %144 = vmatpush1.msra.mxu0 0.0
    %145 = vmatprep.subr.mxu0 0.0
    %146 = vmatpush1.msra.mxu0 0.0
    %147 = vmatprep.subr.mxu0 0.0
    %148 = vmatpush1.msra.mxu0 0.0
    %149 = vmatprep.subr.mxu0 0.0
    %150 = vmatpush1.msra.mxu0 0.0
    %151 = vmatprep.subr.mxu0 0.0
    %152 = vmatpush1.msra.mxu0 0.0
    %153 = vmatprep.subr.mxu0 0.0
    %154 = vmatpush1.msra.mxu0 0.0
    %155 = vmatprep.subr.mxu0 0.0
    %156 = vmatpush1.msra.mxu0 0.0
    %157 = vmatprep.subr.mxu0 0.0
    %158 = vmatpush1.msra.mxu0 0.0
    %159 = vmatprep.mubr.f32.mxu0 0.0
    %160 = vmatmul.mubr.f32.gmra.mrb[0].mxu0 %v48
    %v161 = vpop.f32.mrb[0].mxu0
    %v162 = vadd.f32 0.0, %v161
    %v163 = vpop.f32.mrb[0].mxu0
    %164 = vmatprep.mubr.f32.mxu0 0.0
    %165 = vmatmul.mubr.f32.gmra.mrb[0].mxu0 %v51
    %v166 = vpop.f32.mrb[0].mxu0
    %v167 = vadd.f32 0.0, %v166
    %v168 = vpop.f32.mrb[0].mxu0
    %169 = vmatprep.mubr.f32.mxu0 0.0
    %170 = vmatmul.mubr.f32.gmra.mrb[0].mxu0 %v54
    %v171 = vpop.f32.mrb[0].mxu0
    %v172 = vadd.f32 0.0, %v171
    %v173 = vpop.f32.mrb[0].mxu0
    %174 = vmatprep.mubr.f32.mxu0 0.0
    %175 = vmatmul.mubr.f32.gmra.mrb[0].mxu0 %v57
    %v176 = vpop.f32.mrb[0].mxu0
    %v177 = vadd.f32 0.0, %v176
    %v178 = vpop.f32.mrb[0].mxu0
    %179 = vmatprep.mubr.f32.mxu0 0.0
    %180 = vmatmul.mubr.f32.gmra.mrb[0].mxu0 %v60
    %v181 = vpop.f32.mrb[0].mxu0
    %v182 = vadd.f32 0.0, %v181
    %v183 = vpop.f32.mrb[0].mxu0
    %184 = vmatprep.mubr.f32.mxu0 0.0
    %185 = vmatmul.mubr.f32.gmra.mrb[0].mxu0 %v63
    %v186 = vpop.f32.mrb[0].mxu0
    %v187 = vadd.f32 0.0, %v186
    %v188 = vpop.f32.mrb[0].mxu0
    %189 = vmatprep.mubr.f32.mxu0 0.0
    %190 = vmatmul.mubr.f32.gmra.mrb[0].mxu0 %v66
    %v191 = vpop.f32.mrb[0].mxu0
    %v192 = vadd.f32 0.0, %v191
    %v193 = vpop.f32.mrb[0].mxu0
    %194 = vmatprep.mubr.f32.mxu0 0.0
    %195 = vmatmul.mubr.f32.gmra.mrb[0].mxu0 %v69
    %v196 = vpop.f32.mrb[0].mxu0
    %v197 = vadd.f32 0.0, %v196
    %v198 = vpop.f32.mrb[0].mxu0
    %199 = vmatprep.mubr.f32.mxu0 0.0
    %200 = vmatmul.mubr.f32.gmra.mrb[0].mxu0 %v72
    %v201 = vpop.f32.mrb[0].mxu0
    %v202 = vadd.f32 0.0, %v201
    %v203 = vpop.f32.mrb[0].mxu0
    %204 = vmatprep.mubr.f32.mxu0 0.0
    %205 = vmatmul.mubr.f32.gmra.mrb[0].mxu0 %v75
    %v206 = vpop.f32.mrb[0].mxu0
    %v207 = vadd.f32 0.0, %v206
    %v208 = vpop.f32.mrb[0].mxu0
    %209 = vmatprep.mubr.f32.mxu0 0.0
    %210 = vmatmul.mubr.f32.gmra.mrb[0].mxu0 %v78
    %v211 = vpop.f32.mrb[0].mxu0
    %v212 = vadd.f32 0.0, %v211
    %v213 = vpop.f32.mrb[0].mxu0
    %214 = vmatprep.mubr.f32.mxu0 0.0
    %215 = vmatmul.mubr.f32.gmra.mrb[0].mxu0 %v81
    %v216 = vpop.f32.mrb[0].mxu0
    %v217 = vadd.f32 0.0, %v216
    %v218 = vpop.f32.mrb[0].mxu0
    %219 = vmatprep.mubr.f32.mxu0 0.0
    %220 = vmatmul.mubr.f32.gmra.mrb[0].mxu0 %v84
    %v221 = vpop.f32.mrb[0].mxu0
    %v222 = vadd.f32 0.0, %v221
    %v223 = vpop.f32.mrb[0].mxu0
    %224 = vmatprep.mubr.f32.mxu0 0.0
    %225 = vmatmul.mubr.f32.gmra.mrb[0].mxu0 %v87
    %v226 = vpop.f32.mrb[0].mxu0
    %v227 = vadd.f32 0.0, %v226
    %v228 = vpop.f32.mrb[0].mxu0
    %229 = vmatprep.mubr.f32.mxu0 0.0
    %230 = vmatmul.mubr.f32.gmra.mrb[0].mxu0 %v90
    %v231 = vpop.f32.mrb[0].mxu0
    %v232 = vadd.f32 0.0, %v231
    %v233 = vpop.f32.mrb[0].mxu0
    %234 = vmatprep.mubr.f32.mxu0 0.0
    %235 = vmatmul.mubr.f32.gmra.mrb[0].mxu0 %v93
    %v236 = vpop.f32.mrb[0].mxu0
    %v237 = vadd.f32 0.0, %v236
    %v238 = vpop.f32.mrb[0].mxu0
    %239 = vdwg.mxu0
    %v240 = vmul.f32 %v162, 0.99999
    %v241 = vmul.f32 %v167, 0.99999
    %v242 = vmul.f32 %v172, 0.99999
    %v243 = vmul.f32 %v177, 0.99999
    %v244 = vmul.f32 %v182, 0.99999
    %v245 = vmul.f32 %v187, 0.99999
    %v246 = vmul.f32 %v192, 0.99999
    %v247 = vmul.f32 %v197, 0.99999
    %v248 = vmul.f32 %v202, 0.99999
    %v249 = vmul.f32 %v207, 0.99999
    %v250 = vmul.f32 %v212, 0.99999
    %v251 = vmul.f32 %v217, 0.99999
    %v252 = vmul.f32 %v222, 0.99999
    %v253 = vmul.f32 %v227, 0.99999
    %v254 = vmul.f32 %v232, 0.99999
    %v255 = vmul.f32 %v237, 0.99999
    %v256 = vmax.f32 %v240, -0.99999
    %v257 = vmax.f32 %v241, -0.99999
    %v258 = vmax.f32 %v242, -0.99999
    %v259 = vmax.f32 %v243, -0.99999
    %v260 = vmax.f32 %v244, -0.99999
    %v261 = vmax.f32 %v245, -0.99999
    %v262 = vmax.f32 %v246, -0.99999
    %v263 = vmax.f32 %v247, -0.99999
    %v264 = vmax.f32 %v248, -0.99999
    %v265 = vmax.f32 %v249, -0.99999
    %v266 = vmax.f32 %v250, -0.99999
    %v267 = vmax.f32 %v251, -0.99999
    %v268 = vmax.f32 %v252, -0.99999
    %v269 = vmax.f32 %v253, -0.99999
    %v270 = vmax.f32 %v254, -0.99999
    %v271 = vmax.f32 %v255, -0.99999
    %v272 = vmin.f32 %v256, 0.99999
    %v273 = vmin.f32 %v257, 0.99999
    %v274 = vmin.f32 %v258, 0.99999
    %v275 = vmin.f32 %v259, 0.99999
    %v276 = vmin.f32 %v260, 0.99999
    %v277 = vmin.f32 %v261, 0.99999
    %v278 = vmin.f32 %v262, 0.99999
    %v279 = vmin.f32 %v263, 0.99999
    %v280 = vmin.f32 %v264, 0.99999
    %v281 = vmin.f32 %v265, 0.99999
    %v282 = vmin.f32 %v266, 0.99999
    %v283 = vmin.f32 %v267, 0.99999
    %v284 = vmin.f32 %v268, 0.99999
    %v285 = vmin.f32 %v269, 0.99999
    %v286 = vmin.f32 %v270, 0.99999
    %v287 = vmin.f32 %v271, 0.99999
    %v288 = vand.u32 2147483647, %v272
    %v289 = vand.u32 2147483647, %v273
    %v290 = vand.u32 2147483647, %v274
    %v291 = vand.u32 2147483647, %v275
    %v292 = vand.u32 2147483647, %v276
    %v293 = vand.u32 2147483647, %v277
    %v294 = vand.u32 2147483647, %v278
    %v295 = vand.u32 2147483647, %v279
    %v296 = vand.u32 2147483647, %v280
    %v297 = vand.u32 2147483647, %v281
    %v298 = vand.u32 2147483647, %v282
    %v299 = vand.u32 2147483647, %v283
    %v300 = vand.u32 2147483647, %v284
    %v301 = vand.u32 2147483647, %v285
    %v302 = vand.u32 2147483647, %v286
    %v303 = vand.u32 2147483647, %v287
    %v304 = vmul.f32 %v288, -0.0012624911
    %v305 = vmul.f32 %v289, -0.0012624911
    %v306 = vmul.f32 %v290, -0.0012624911
    %v307 = vmul.f32 %v291, -0.0012624911
    %v308 = vmul.f32 %v292, -0.0012624911
    %v309 = vmul.f32 %v293, -0.0012624911
    %v310 = vmul.f32 %v294, -0.0012624911
    %v311 = vmul.f32 %v295, -0.0012624911
    %v312 = vmul.f32 %v296, -0.0012624911
    %v313 = vmul.f32 %v297, -0.0012624911
    %v314 = vmul.f32 %v298, -0.0012624911
    %v315 = vmul.f32 %v299, -0.0012624911
    %v316 = vmul.f32 %v300, -0.0012624911
    %v317 = vmul.f32 %v301, -0.0012624911
    %v318 = vmul.f32 %v302, -0.0012624911
    %v319 = vmul.f32 %v303, -0.0012624911
    %v320 = vadd.f32 %v304, 0.00667009
    %v321 = vadd.f32 %v305, 0.00667009
    %v322 = vadd.f32 %v306, 0.00667009
    %v323 = vadd.f32 %v307, 0.00667009
    %v324 = vadd.f32 %v308, 0.00667009
    %v325 = vadd.f32 %v309, 0.00667009
    %v326 = vadd.f32 %v310, 0.00667009
    %v327 = vadd.f32 %v311, 0.00667009
    %v328 = vadd.f32 %v312, 0.00667009
    %v329 = vadd.f32 %v313, 0.00667009
    %v330 = vadd.f32 %v314, 0.00667009
    %v331 = vadd.f32 %v315, 0.00667009
    %v332 = vadd.f32 %v316, 0.00667009
    %v333 = vadd.f32 %v317, 0.00667009
    %v334 = vadd.f32 %v318, 0.00667009
    %v335 = vadd.f32 %v319, 0.00667009
    %v336 = vmul.f32 %v320, %v288
    %v337 = vmul.f32 %v321, %v289
    %v338 = vmul.f32 %v322, %v290
    %v339 = vmul.f32 %v323, %v291
    %v340 = vmul.f32 %v324, %v292
    %v341 = vmul.f32 %v325, %v293
    %v342 = vmul.f32 %v326, %v294
    %v343 = vmul.f32 %v327, %v295
    %v344 = vmul.f32 %v328, %v296
    %v345 = vmul.f32 %v329, %v297
    %v346 = vmul.f32 %v330, %v298
    %v347 = vmul.f32 %v331, %v299
    %v348 = vmul.f32 %v332, %v300
    %v349 = vmul.f32 %v333, %v301
    %v350 = vmul.f32 %v334, %v302
    %v351 = vmul.f32 %v335, %v303
    %v352 = vadd.f32 %v336, -0.017088126
    %v353 = vadd.f32 %v337, -0.017088126
    %v354 = vadd.f32 %v338, -0.017088126
    %v355 = vadd.f32 %v339, -0.017088126
    %v356 = vadd.f32 %v340, -0.017088126
    %v357 = vadd.f32 %v341, -0.017088126
    %v358 = vadd.f32 %v342, -0.017088126
    %v359 = vadd.f32 %v343, -0.017088126
    %v360 = vadd.f32 %v344, -0.017088126
    %v361 = vadd.f32 %v345, -0.017088126
    %v362 = vadd.f32 %v346, -0.017088126
    %v363 = vadd.f32 %v347, -0.017088126
    %v364 = vadd.f32 %v348, -0.017088126
    %v365 = vadd.f32 %v349, -0.017088126
    %v366 = vadd.f32 %v350, -0.017088126
    %v367 = vadd.f32 %v351, -0.017088126
    %v368 = vmul.f32 %v352, %v288
    %v369 = vmul.f32 %v353, %v289
    %v370 = vmul.f32 %v354, %v290
    %v371 = vmul.f32 %v355, %v291
    %v372 = vmul.f32 %v356, %v292
    %v373 = vmul.f32 %v357, %v293
    %v374 = vmul.f32 %v358, %v294
    %v375 = vmul.f32 %v359, %v295
    %v376 = vmul.f32 %v360, %v296
    %v377 = vmul.f32 %v361, %v297
    %v378 = vmul.f32 %v362, %v298
    %v379 = vmul.f32 %v363, %v299
    %v380 = vmul.f32 %v364, %v300
    %v381 = vmul.f32 %v365, %v301
    %v382 = vmul.f32 %v366, %v302
    %v383 = vmul.f32 %v367, %v303
    %v384 = vadd.f32 %v368, 0.03089188
    %v385 = vadd.f32 %v369, 0.03089188
    %v386 = vadd.f32 %v370, 0.03089188
    %v387 = vadd.f32 %v371, 0.03089188
    %v388 = vadd.f32 %v372, 0.03089188
    %v389 = vadd.f32 %v373, 0.03089188
    %v390 = vadd.f32 %v374, 0.03089188
    %v391 = vadd.f32 %v375, 0.03089188
    %v392 = vadd.f32 %v376, 0.03089188
    %v393 = vadd.f32 %v377, 0.03089188
    %v394 = vadd.f32 %v378, 0.03089188
    %v395 = vadd.f32 %v379, 0.03089188
    %v396 = vadd.f32 %v380, 0.03089188
    %v397 = vadd.f32 %v381, 0.03089188
    %v398 = vadd.f32 %v382, 0.03089188
    %v399 = vadd.f32 %v383, 0.03089188
    %v400 = vmul.f32 %v384, %v288
    %v401 = vmul.f32 %v385, %v289
    %v402 = vmul.f32 %v386, %v290
    %v403 = vmul.f32 %v387, %v291
    %v404 = vmul.f32 %v388, %v292
    %v405 = vmul.f32 %v389, %v293
    %v406 = vmul.f32 %v390, %v294
    %v407 = vmul.f32 %v391, %v295
    %v408 = vmul.f32 %v392, %v296
    %v409 = vmul.f32 %v393, %v297
    %v410 = vmul.f32 %v394, %v298
    %v411 = vmul.f32 %v395, %v299
    %v412 = vmul.f32 %v396, %v300
    %v413 = vmul.f32 %v397, %v301
    %v414 = vmul.f32 %v398, %v302
    %v415 = vmul.f32 %v399, %v303
    %v416 = vadd.f32 %v400, -0.050174303
    %v417 = vadd.f32 %v401, -0.050174303
    %v418 = vadd.f32 %v402, -0.050174303
    %v419 = vadd.f32 %v403, -0.050174303
    %v420 = vadd.f32 %v404, -0.050174303
    %v421 = vadd.f32 %v405, -0.050174303
    %v422 = vadd.f32 %v406, -0.050174303
    %v423 = vadd.f32 %v407, -0.050174303
    %v424 = vadd.f32 %v408, -0.050174303
    %v425 = vadd.f32 %v409, -0.050174303
    %v426 = vadd.f32 %v410, -0.050174303
    %v427 = vadd.f32 %v411, -0.050174303
    %v428 = vadd.f32 %v412, -0.050174303
    %v429 = vadd.f32 %v413, -0.050174303
    %v430 = vadd.f32 %v414, -0.050174303
    %v431 = vadd.f32 %v415, -0.050174303
    %v432 = vmul.f32 %v416, %v288
    %v433 = vmul.f32 %v417, %v289
    %v434 = vmul.f32 %v418, %v290
    %v435 = vmul.f32 %v419, %v291
    %v436 = vmul.f32 %v420, %v292
    %v437 = vmul.f32 %v421, %v293
    %v438 = vmul.f32 %v422, %v294
    %v439 = vmul.f32 %v423, %v295
    %v440 = vmul.f32 %v424, %v296
    %v441 = vmul.f32 %v425, %v297
    %v442 = vmul.f32 %v426, %v298
    %v443 = vmul.f32 %v427, %v299
    %v444 = vmul.f32 %v428, %v300
    %v445 = vmul.f32 %v429, %v301
    %v446 = vmul.f32 %v430, %v302
    %v447 = vmul.f32 %v431, %v303
    %v448 = vadd.f32 %v432, 0.08897899
    %v449 = vadd.f32 %v433, 0.08897899
    %v450 = vadd.f32 %v434, 0.08897899
    %v451 = vadd.f32 %v435, 0.08897899
    %v452 = vadd.f32 %v436, 0.08897899
    %v453 = vadd.f32 %v437, 0.08897899
    %v454 = vadd.f32 %v438, 0.08897899
    %v455 = vadd.f32 %v439, 0.08897899
    %v456 = vadd.f32 %v440, 0.08897899
    %v457 = vadd.f32 %v441, 0.08897899
    %v458 = vadd.f32 %v442, 0.08897899
    %v459 = vadd.f32 %v443, 0.08897899
    %v460 = vadd.f32 %v444, 0.08897899
    %v461 = vadd.f32 %v445, 0.08897899
    %v462 = vadd.f32 %v446, 0.08897899
    %v463 = vadd.f32 %v447, 0.08897899
    %v464 = vmul.f32 %v448, %v288
    %v465 = vmul.f32 %v449, %v289
    %v466 = vmul.f32 %v450, %v290
    %v467 = vmul.f32 %v451, %v291
    %v468 = vmul.f32 %v452, %v292
    %v469 = vmul.f32 %v453, %v293
    %v470 = vmul.f32 %v454, %v294
    %v471 = vmul.f32 %v455, %v295
    %v472 = vmul.f32 %v456, %v296
    %v473 = vmul.f32 %v457, %v297
    %v474 = vmul.f32 %v458, %v298
    %v475 = vmul.f32 %v459, %v299
    %v476 = vmul.f32 %v460, %v300
    %v477 = vmul.f32 %v461, %v301
    %v478 = vmul.f32 %v462, %v302
    %v479 = vmul.f32 %v463, %v303
    %v480 = vadd.f32 %v464, -0.2145988
    %v481 = vadd.f32 %v465, -0.2145988
    %v482 = vadd.f32 %v466, -0.2145988
    %v483 = vadd.f32 %v467, -0.2145988
    %v484 = vadd.f32 %v468, -0.2145988
    %v485 = vadd.f32 %v469, -0.2145988
    %v486 = vadd.f32 %v470, -0.2145988
    %v487 = vadd.f32 %v471, -0.2145988
    %v488 = vadd.f32 %v472, -0.2145988
    %v489 = vadd.f32 %v473, -0.2145988
    %v490 = vadd.f32 %v474, -0.2145988
    %v491 = vadd.f32 %v475, -0.2145988
    %v492 = vadd.f32 %v476, -0.2145988
    %v493 = vadd.f32 %v477, -0.2145988
    %v494 = vadd.f32 %v478, -0.2145988
    %v495 = vadd.f32 %v479, -0.2145988
    %v496 = vmul.f32 %v480, %v288
    %v497 = vmul.f32 %v481, %v289
    %v498 = vmul.f32 %v482, %v290
    %v499 = vmul.f32 %v483, %v291
    %v500 = vmul.f32 %v484, %v292
    %v501 = vmul.f32 %v485, %v293
    %v502 = vmul.f32 %v486, %v294
    %v503 = vmul.f32 %v487, %v295
    %v504 = vmul.f32 %v488, %v296
    %v505 = vmul.f32 %v489, %v297
    %v506 = vmul.f32 %v490, %v298
    %v507 = vmul.f32 %v491, %v299
    %v508 = vmul.f32 %v492, %v300
    %v509 = vmul.f32 %v493, %v301
    %v510 = vmul.f32 %v494, %v302
    %v511 = vmul.f32 %v495, %v303
    %v512 = vadd.f32 %v496, 1.5707963
    %v513 = vadd.f32 %v497, 1.5707963
    %v514 = vadd.f32 %v498, 1.5707963
    %v515 = vadd.f32 %v499, 1.5707963
    %v516 = vadd.f32 %v500, 1.5707963
    %v517 = vadd.f32 %v501, 1.5707963
    %v518 = vadd.f32 %v502, 1.5707963
    %v519 = vadd.f32 %v503, 1.5707963
    %v520 = vadd.f32 %v504, 1.5707963
    %v521 = vadd.f32 %v505, 1.5707963
    %v522 = vadd.f32 %v506, 1.5707963
    %v523 = vadd.f32 %v507, 1.5707963
    %v524 = vadd.f32 %v508, 1.5707963
    %v525 = vadd.f32 %v509, 1.5707963
    %v526 = vadd.f32 %v510, 1.5707963
    %v527 = vadd.f32 %v511, 1.5707963
    %v528 = vsub.f32 1.0, %v288
    %v529 = vsub.f32 1.0, %v289
    %v530 = vsub.f32 1.0, %v290
    %v531 = vsub.f32 1.0, %v291
    %v532 = vsub.f32 1.0, %v292
    %v533 = vsub.f32 1.0, %v293
    %v534 = vsub.f32 1.0, %v294
    %v535 = vsub.f32 1.0, %v295
    %v536 = vsub.f32 1.0, %v296
    %v537 = vsub.f32 1.0, %v297
    %v538 = vsub.f32 1.0, %v298
    %v539 = vsub.f32 1.0, %v299
    %v540 = vsub.f32 1.0, %v300
    %v541 = vsub.f32 1.0, %v301
    %v542 = vsub.f32 1.0, %v302
    %v543 = vsub.f32 1.0, %v303
    %v544 = vmax.f32 %v528, 0.0
    %v545 = vmax.f32 %v529, 0.0
    %v546 = vmax.f32 %v530, 0.0
    %v547 = vmax.f32 %v531, 0.0
    %v548 = vmax.f32 %v532, 0.0
    %v549 = vmax.f32 %v533, 0.0
    %v550 = vmax.f32 %v534, 0.0
    %v551 = vmax.f32 %v535, 0.0
    %v552 = vmax.f32 %v536, 0.0
    %v553 = vmax.f32 %v537, 0.0
    %v554 = vmax.f32 %v538, 0.0
    %v555 = vmax.f32 %v539, 0.0
    %v556 = vmax.f32 %v540, 0.0
    %v557 = vmax.f32 %v541, 0.0
    %v558 = vmax.f32 %v542, 0.0
    %v559 = vmax.f32 %v543, 0.0
    %v560 = vrsqrt.pop %v544
    %v561 = vmul.f32 %v544, %v560
    %vm562 = vcmp.eq.f32.partialorder %v544, inf
    %v563 = vsel %vm562, %v544, %v561
    %vm564 = vcmp.eq.f32.partialorder %v544, 0.0
    %v565 = vand.u32 %v544, 2147483648
    %v566 = vsel %vm564, %v565, %v563
    %v567 = vrsqrt.pop %v545
    %v568 = vmul.f32 %v545, %v567
    %vm569 = vcmp.eq.f32.partialorder %v545, inf
    %v570 = vsel %vm569, %v545, %v568
    %vm571 = vcmp.eq.f32.partialorder %v545, 0.0
    %v572 = vand.u32 %v545, 2147483648
    %v573 = vsel %vm571, %v572, %v570
    %v574 = vrsqrt.pop %v546
    %v575 = vmul.f32 %v546, %v574
    %vm576 = vcmp.eq.f32.partialorder %v546, inf
    %v577 = vsel %vm576, %v546, %v575
    %vm578 = vcmp.eq.f32.partialorder %v546, 0.0
    %v579 = vand.u32 %v546, 2147483648
    %v580 = vsel %vm578, %v579, %v577
    %v581 = vrsqrt.pop %v547
    %v582 = vmul.f32 %v547, %v581
    %vm583 = vcmp.eq.f32.partialorder %v547, inf
    %v584 = vsel %vm583, %v547, %v582
    %vm585 = vcmp.eq.f32.partialorder %v547, 0.0
    %v586 = vand.u32 %v547, 2147483648
    %v587 = vsel %vm585, %v586, %v584
    %v588 = vrsqrt.pop %v548
    %v589 = vmul.f32 %v548, %v588
    %vm590 = vcmp.eq.f32.partialorder %v548, inf
    %v591 = vsel %vm590, %v548, %v589
    %vm592 = vcmp.eq.f32.partialorder %v548, 0.0
    %v593 = vand.u32 %v548, 2147483648
    %v594 = vsel %vm592, %v593, %v591
    %v595 = vrsqrt.pop %v549
    %v596 = vmul.f32 %v549, %v595
    %vm597 = vcmp.eq.f32.partialorder %v549, inf
    %v598 = vsel %vm597, %v549, %v596
    %vm599 = vcmp.eq.f32.partialorder %v549, 0.0
    %v600 = vand.u32 %v549, 2147483648
    %v601 = vsel %vm599, %v600, %v598
    %v602 = vrsqrt.pop %v550
    %v603 = vmul.f32 %v550, %v602
    %vm604 = vcmp.eq.f32.partialorder %v550, inf
    %v605 = vsel %vm604, %v550, %v603
    %vm606 = vcmp.eq.f32.partialorder %v550, 0.0
    %v607 = vand.u32 %v550, 2147483648
    %v608 = vsel %vm606, %v607, %v605
    %v609 = vrsqrt.pop %v551
    %v610 = vmul.f32 %v551, %v609
    %vm611 = vcmp.eq.f32.partialorder %v551, inf
    %v612 = vsel %vm611, %v551, %v610
    %vm613 = vcmp.eq.f32.partialorder %v551, 0.0
    %v614 = vand.u32 %v551, 2147483648
    %v615 = vsel %vm613, %v614, %v612
    %v616 = vrsqrt.pop %v552
    %v617 = vmul.f32 %v552, %v616
    %vm618 = vcmp.eq.f32.partialorder %v552, inf
    %v619 = vsel %vm618, %v552, %v617
    %vm620 = vcmp.eq.f32.partialorder %v552, 0.0
    %v621 = vand.u32 %v552, 2147483648
    %v622 = vsel %vm620, %v621, %v619
    %v623 = vrsqrt.pop %v553
    %v624 = vmul.f32 %v553, %v623
    %vm625 = vcmp.eq.f32.partialorder %v553, inf
    %v626 = vsel %vm625, %v553, %v624
    %vm627 = vcmp.eq.f32.partialorder %v553, 0.0
    %v628 = vand.u32 %v553, 2147483648
    %v629 = vsel %vm627, %v628, %v626
    %v630 = vrsqrt.pop %v554
    %v631 = vmul.f32 %v554, %v630
    %vm632 = vcmp.eq.f32.partialorder %v554, inf
    %v633 = vsel %vm632, %v554, %v631
    %vm634 = vcmp.eq.f32.partialorder %v554, 0.0
    %v635 = vand.u32 %v554, 2147483648
    %v636 = vsel %vm634, %v635, %v633
    %v637 = vrsqrt.pop %v555
    %v638 = vmul.f32 %v555, %v637
    %vm639 = vcmp.eq.f32.partialorder %v555, inf
    %v640 = vsel %vm639, %v555, %v638
    %vm641 = vcmp.eq.f32.partialorder %v555, 0.0
    %v642 = vand.u32 %v555, 2147483648
    %v643 = vsel %vm641, %v642, %v640
    %v644 = vrsqrt.pop %v556
    %v645 = vmul.f32 %v556, %v644
    %vm646 = vcmp.eq.f32.partialorder %v556, inf
    %v647 = vsel %vm646, %v556, %v645
    %vm648 = vcmp.eq.f32.partialorder %v556, 0.0
    %v649 = vand.u32 %v556, 2147483648
    %v650 = vsel %vm648, %v649, %v647
    %v651 = vrsqrt.pop %v557
    %v652 = vmul.f32 %v557, %v651
    %vm653 = vcmp.eq.f32.partialorder %v557, inf
    %v654 = vsel %vm653, %v557, %v652
    %vm655 = vcmp.eq.f32.partialorder %v557, 0.0
    %v656 = vand.u32 %v557, 2147483648
    %v657 = vsel %vm655, %v656, %v654
    %v658 = vrsqrt.pop %v558
    %v659 = vmul.f32 %v558, %v658
    %vm660 = vcmp.eq.f32.partialorder %v558, inf
    %v661 = vsel %vm660, %v558, %v659
    %vm662 = vcmp.eq.f32.partialorder %v558, 0.0
    %v663 = vand.u32 %v558, 2147483648
    %v664 = vsel %vm662, %v663, %v661
    %v665 = vrsqrt.pop %v559
    %v666 = vmul.f32 %v559, %v665
    %vm667 = vcmp.eq.f32.partialorder %v559, inf
    %v668 = vsel %vm667, %v559, %v666
    %vm669 = vcmp.eq.f32.partialorder %v559, 0.0
    %v670 = vand.u32 %v559, 2147483648
    %v671 = vsel %vm669, %v670, %v668
    %v672 = vmul.f32 %v566, %v512
    %v673 = vmul.f32 %v573, %v513
    %v674 = vmul.f32 %v580, %v514
    %v675 = vmul.f32 %v587, %v515
    %v676 = vmul.f32 %v594, %v516
    %v677 = vmul.f32 %v601, %v517
    %v678 = vmul.f32 %v608, %v518
    %v679 = vmul.f32 %v615, %v519
    %v680 = vmul.f32 %v622, %v520
    %v681 = vmul.f32 %v629, %v521
    %v682 = vmul.f32 %v636, %v522
    %v683 = vmul.f32 %v643, %v523
    %v684 = vmul.f32 %v650, %v524
    %v685 = vmul.f32 %v657, %v525
    %v686 = vmul.f32 %v664, %v526
    %v687 = vmul.f32 %v671, %v527
    %vm688 = vcmp.ge.f32.partialorder %v272, 0.0
    %vm689 = vcmp.ge.f32.partialorder %v273, 0.0
    %vm690 = vcmp.ge.f32.partialorder %v274, 0.0
    %vm691 = vcmp.ge.f32.partialorder %v275, 0.0
    %vm692 = vcmp.ge.f32.partialorder %v276, 0.0
    %vm693 = vcmp.ge.f32.partialorder %v277, 0.0
    %vm694 = vcmp.ge.f32.partialorder %v278, 0.0
    %vm695 = vcmp.ge.f32.partialorder %v279, 0.0
    %vm696 = vcmp.ge.f32.partialorder %v280, 0.0
    %vm697 = vcmp.ge.f32.partialorder %v281, 0.0
    %vm698 = vcmp.ge.f32.partialorder %v282, 0.0
    %vm699 = vcmp.ge.f32.partialorder %v283, 0.0
    %vm700 = vcmp.ge.f32.partialorder %v284, 0.0
    %vm701 = vcmp.ge.f32.partialorder %v285, 0.0
    %vm702 = vcmp.ge.f32.partialorder %v286, 0.0
    %vm703 = vcmp.ge.f32.partialorder %v287, 0.0
    %v704 = vsub.f32 3.1415927, %v672
    %v705 = vsub.f32 3.1415927, %v673
    %v706 = vsub.f32 3.1415927, %v674
    %v707 = vsub.f32 3.1415927, %v675
    %v708 = vsub.f32 3.1415927, %v676
    %v709 = vsub.f32 3.1415927, %v677
    %v710 = vsub.f32 3.1415927, %v678
    %v711 = vsub.f32 3.1415927, %v679
    %v712 = vsub.f32 3.1415927, %v680
    %v713 = vsub.f32 3.1415927, %v681
    %v714 = vsub.f32 3.1415927, %v682
    %v715 = vsub.f32 3.1415927, %v683
    %v716 = vsub.f32 3.1415927, %v684
    %v717 = vsub.f32 3.1415927, %v685
    %v718 = vsub.f32 3.1415927, %v686
    %v719 = vsub.f32 3.1415927, %v687
    %v720 = vsel %vm688, %v672, %v704
    %v721 = vsel %vm689, %v673, %v705
    %v722 = vsel %vm690, %v674, %v706
    %v723 = vsel %vm691, %v675, %v707
    %v724 = vsel %vm692, %v676, %v708
    %v725 = vsel %vm693, %v677, %v709
    %v726 = vsel %vm694, %v678, %v710
    %v727 = vsel %vm695, %v679, %v711
    %v728 = vsel %vm696, %v680, %v712
    %v729 = vsel %vm697, %v681, %v713
    %v730 = vsel %vm698, %v682, %v714
    %v731 = vsel %vm699, %v683, %v715
    %v732 = vsel %vm700, %v684, %v716
    %v733 = vsel %vm701, %v685, %v717
    %v734 = vsel %vm702, %v686, %v718
    %v735 = vsel %vm703, %v687, %v719
    %v736 = vmul.f32 %v720, 0.31830987
    %v737 = vmul.f32 %v721, 0.31830987
    %v738 = vmul.f32 %v722, 0.31830987
    %v739 = vmul.f32 %v723, 0.31830987
    %v740 = vmul.f32 %v724, 0.31830987
    %v741 = vmul.f32 %v725, 0.31830987
    %v742 = vmul.f32 %v726, 0.31830987
    %v743 = vmul.f32 %v727, 0.31830987
    %v744 = vmul.f32 %v728, 0.31830987
    %v745 = vmul.f32 %v729, 0.31830987
    %v746 = vmul.f32 %v730, 0.31830987
    %v747 = vmul.f32 %v731, 0.31830987
    %v748 = vmul.f32 %v732, 0.31830987
    %v749 = vmul.f32 %v733, 0.31830987
    %v750 = vmul.f32 %v734, 0.31830987
    %v751 = vmul.f32 %v735, 0.31830987
    %v752 = vsub.f32 1.0, %v736
    %v753 = vsub.f32 1.0, %v737
    %v754 = vsub.f32 1.0, %v738
    %v755 = vsub.f32 1.0, %v739
    %v756 = vsub.f32 1.0, %v740
    %v757 = vsub.f32 1.0, %v741
    %v758 = vsub.f32 1.0, %v742
    %v759 = vsub.f32 1.0, %v743
    %v760 = vsub.f32 1.0, %v744
    %v761 = vsub.f32 1.0, %v745
    %v762 = vsub.f32 1.0, %v746
    %v763 = vsub.f32 1.0, %v747
    %v764 = vsub.f32 1.0, %v748
    %v765 = vsub.f32 1.0, %v749
    %v766 = vsub.f32 1.0, %v750
    %v767 = vsub.f32 1.0, %v751
    %v768 = vld [vmem:[%s2] sm:$0xff]
    %v769 = vld [vmem:[%s2 + $0x8] sm:$0xff]
    %v770 = vld [vmem:[%s2 + $0x10] sm:$0xff]
    %v771 = vld [vmem:[%s2 + $0x18] sm:$0xff]
    %v772 = vld [vmem:[%s2 + $0x20] sm:$0xff]
    %v773 = vld [vmem:[%s2 + $0x28] sm:$0xff]
    %v774 = vld [vmem:[%s2 + $0x30] sm:$0xff]
    %v775 = vld [vmem:[%s2 + $0x38] sm:$0xff]
    %v776 = vld [vmem:[%s2 + $0x40] sm:$0xff]
    %v777 = vld [vmem:[%s2 + $0x48] sm:$0xff]
    %v778 = vld [vmem:[%s2 + $0x50] sm:$0xff]
    %v779 = vld [vmem:[%s2 + $0x58] sm:$0xff]
    %v780 = vld [vmem:[%s2 + $0x60] sm:$0xff]
    %v781 = vld [vmem:[%s2 + $0x68] sm:$0xff]
    %v782 = vld [vmem:[%s2 + $0x70] sm:$0xff]
    %v783 = vld [vmem:[%s2 + $0x78] sm:$0xff]
    %v784 = vld [vmem:[%s3] sm:$0x1]
    %785 = vset.pattern.permute.xlu0 0
    %786 = vperm.xlu0 %785, %v768
    %v787 = vpop.permute.xlu0 %786
    %788 = vset.pattern.permute.xlu0 0
    %789 = vperm.xlu0 %788, %v769
    %v790 = vpop.permute.xlu0 %789
    %791 = vset.pattern.permute.xlu0 0
    %792 = vperm.xlu0 %791, %v770
    %v793 = vpop.permute.xlu0 %792
    %794 = vset.pattern.permute.xlu0 0
    %795 = vperm.xlu0 %794, %v771
    %v796 = vpop.permute.xlu0 %795
    %797 = vset.pattern.permute.xlu0 0
    %798 = vperm.xlu0 %797, %v772
    %v799 = vpop.permute.xlu0 %798
    %800 = vset.pattern.permute.xlu0 0
    %801 = vperm.xlu0 %800, %v773
    %v802 = vpop.permute.xlu0 %801
    %803 = vset.pattern.permute.xlu0 0
    %804 = vperm.xlu0 %803, %v774
    %v805 = vpop.permute.xlu0 %804
    %806 = vset.pattern.permute.xlu0 0
    %807 = vperm.xlu0 %806, %v775
    %v808 = vpop.permute.xlu0 %807
    %809 = vset.pattern.permute.xlu0 0
    %810 = vperm.xlu0 %809, %v776
    %v811 = vpop.permute.xlu0 %810
    %812 = vset.pattern.permute.xlu0 0
    %813 = vperm.xlu0 %812, %v777
    %v814 = vpop.permute.xlu0 %813
    %815 = vset.pattern.permute.xlu0 0
    %816 = vperm.xlu0 %815, %v778
    %v817 = vpop.permute.xlu0 %816
    %818 = vset.pattern.permute.xlu0 0
    %819 = vperm.xlu0 %818, %v779
    %v820 = vpop.permute.xlu0 %819
    %821 = vset.pattern.permute.xlu0 0
    %822 = vperm.xlu0 %821, %v780
    %v823 = vpop.permute.xlu0 %822
    %824 = vset.pattern.permute.xlu0 0
    %825 = vperm.xlu0 %824, %v781
    %v826 = vpop.permute.xlu0 %825
    %827 = vset.pattern.permute.xlu0 0
    %828 = vperm.xlu0 %827, %v782
    %v829 = vpop.permute.xlu0 %828
    %830 = vset.pattern.permute.xlu0 0
    %831 = vperm.xlu0 %830, %v783
    %v832 = vpop.permute.xlu0 %831
    %v833 = vlaneseq
    %v834 = vshrl.u32 %v833, 7
    %v835 = vsub.s32 0, %v834
    %v836 = vrot.slane %v784, %v835
    %vm837 = vcmp.eq.s32.totalorder %v787, %v836
    %vm838 = vcmp.eq.s32.totalorder %v790, %v836
    %vm839 = vcmp.eq.s32.totalorder %v793, %v836
    %vm840 = vcmp.eq.s32.totalorder %v796, %v836
    %vm841 = vcmp.eq.s32.totalorder %v799, %v836
    %vm842 = vcmp.eq.s32.totalorder %v802, %v836
    %vm843 = vcmp.eq.s32.totalorder %v805, %v836
    %vm844 = vcmp.eq.s32.totalorder %v808, %v836
    %vm845 = vcmp.eq.s32.totalorder %v811, %v836
    %vm846 = vcmp.eq.s32.totalorder %v814, %v836
    %vm847 = vcmp.eq.s32.totalorder %v817, %v836
    %vm848 = vcmp.eq.s32.totalorder %v820, %v836
    %vm849 = vcmp.eq.s32.totalorder %v823, %v836
    %vm850 = vcmp.eq.s32.totalorder %v826, %v836
    %vm851 = vcmp.eq.s32.totalorder %v829, %v836
    %vm852 = vcmp.eq.s32.totalorder %v832, %v836
    %v853 = vld [vmem:[%s4] sm:$0xff]
    %v854 = vld [vmem:[%s4 + $0x8] sm:$0xff]
    %v855 = vld [vmem:[%s4 + $0x10] sm:$0xff]
    %v856 = vld [vmem:[%s4 + $0x18] sm:$0xff]
    %v857 = vld [vmem:[%s4 + $0x20] sm:$0xff]
    %v858 = vld [vmem:[%s4 + $0x28] sm:$0xff]
    %v859 = vld [vmem:[%s4 + $0x30] sm:$0xff]
    %v860 = vld [vmem:[%s4 + $0x38] sm:$0xff]
    %v861 = vld [vmem:[%s4 + $0x40] sm:$0xff]
    %v862 = vld [vmem:[%s4 + $0x48] sm:$0xff]
    %v863 = vld [vmem:[%s4 + $0x50] sm:$0xff]
    %v864 = vld [vmem:[%s4 + $0x58] sm:$0xff]
    %v865 = vld [vmem:[%s4 + $0x60] sm:$0xff]
    %v866 = vld [vmem:[%s4 + $0x68] sm:$0xff]
    %v867 = vld [vmem:[%s4 + $0x70] sm:$0xff]
    %v868 = vld [vmem:[%s4 + $0x78] sm:$0xff]
    %v869 = vld [vmem:[%s5] sm:$0x1]
    %870 = vset.pattern.permute.xlu0 0
    %871 = vperm.xlu0 %870, %v853
    %v872 = vpop.permute.xlu0 %871
    %873 = vset.pattern.permute.xlu0 0
    %874 = vperm.xlu0 %873, %v854
    %v875 = vpop.permute.xlu0 %874
    %876 = vset.pattern.permute.xlu0 0
    %877 = vperm.xlu0 %876, %v855
    %v878 = vpop.permute.xlu0 %877
    %879 = vset.pattern.permute.xlu0 0
    %880 = vperm.xlu0 %879, %v856
    %v881 = vpop.permute.xlu0 %880
    %882 = vset.pattern.permute.xlu0 0
    %883 = vperm.xlu0 %882, %v857
    %v884 = vpop.permute.xlu0 %883
    %885 = vset.pattern.permute.xlu0 0
    %886 = vperm.xlu0 %885, %v858
    %v887 = vpop.permute.xlu0 %886
    %888 = vset.pattern.permute.xlu0 0
    %889 = vperm.xlu0 %888, %v859
    %v890 = vpop.permute.xlu0 %889
    %891 = vset.pattern.permute.xlu0 0
    %892 = vperm.xlu0 %891, %v860
    %v893 = vpop.permute.xlu0 %892
    %894 = vset.pattern.permute.xlu0 0
    %895 = vperm.xlu0 %894, %v861
    %v896 = vpop.permute.xlu0 %895
    %897 = vset.pattern.permute.xlu0 0
    %898 = vperm.xlu0 %897, %v862
    %v899 = vpop.permute.xlu0 %898
    %900 = vset.pattern.permute.xlu0 0
    %901 = vperm.xlu0 %900, %v863
    %v902 = vpop.permute.xlu0 %901
    %903 = vset.pattern.permute.xlu0 0
    %904 = vperm.xlu0 %903, %v864
    %v905 = vpop.permute.xlu0 %904
    %906 = vset.pattern.permute.xlu0 0
    %907 = vperm.xlu0 %906, %v865
    %v908 = vpop.permute.xlu0 %907
    %909 = vset.pattern.permute.xlu0 0
    %910 = vperm.xlu0 %909, %v866
    %v911 = vpop.permute.xlu0 %910
    %912 = vset.pattern.permute.xlu0 0
    %913 = vperm.xlu0 %912, %v867
    %v914 = vpop.permute.xlu0 %913
    %915 = vset.pattern.permute.xlu0 0
    %916 = vperm.xlu0 %915, %v868
    %v917 = vpop.permute.xlu0 %916
    %v918 = vlaneseq
    %v919 = vshrl.u32 %v918, 7
    %v920 = vsub.s32 0, %v919
    %v921 = vrot.slane %v869, %v920
    %vm922 = vcmp.eq.s32.totalorder %v872, %v921
    %vm923 = vcmp.eq.s32.totalorder %v875, %v921
    %vm924 = vcmp.eq.s32.totalorder %v878, %v921
    %vm925 = vcmp.eq.s32.totalorder %v881, %v921
    %vm926 = vcmp.eq.s32.totalorder %v884, %v921
    %vm927 = vcmp.eq.s32.totalorder %v887, %v921
    %vm928 = vcmp.eq.s32.totalorder %v890, %v921
    %vm929 = vcmp.eq.s32.totalorder %v893, %v921
    %vm930 = vcmp.eq.s32.totalorder %v896, %v921
    %vm931 = vcmp.eq.s32.totalorder %v899, %v921
    %vm932 = vcmp.eq.s32.totalorder %v902, %v921
    %vm933 = vcmp.eq.s32.totalorder %v905, %v921
    %vm934 = vcmp.eq.s32.totalorder %v908, %v921
    %vm935 = vcmp.eq.s32.totalorder %v911, %v921
    %vm936 = vcmp.eq.s32.totalorder %v914, %v921
    %vm937 = vcmp.eq.s32.totalorder %v917, %v921
    %vm938 = vmor %vm837, %vm922
    %vm939 = vmor %vm838, %vm923
    %vm940 = vmor %vm839, %vm924
    %vm941 = vmor %vm840, %vm925
    %vm942 = vmor %vm841, %vm926
    %vm943 = vmor %vm842, %vm927
    %vm944 = vmor %vm843, %vm928
    %vm945 = vmor %vm844, %vm929
    %vm946 = vmor %vm845, %vm930
    %vm947 = vmor %vm846, %vm931
    %vm948 = vmor %vm847, %vm932
    %vm949 = vmor %vm848, %vm933
    %vm950 = vmor %vm849, %vm934
    %vm951 = vmor %vm850, %vm935
    %vm952 = vmor %vm851, %vm936
    %vm953 = vmor %vm852, %vm937
    %v954 = vsel %vm938, %v752, 0.0
    %v955 = vsel %vm939, %v753, 0.0
    %v956 = vsel %vm940, %v754, 0.0
    %v957 = vsel %vm941, %v755, 0.0
    %v958 = vsel %vm942, %v756, 0.0
    %v959 = vsel %vm943, %v757, 0.0
    %v960 = vsel %vm944, %v758, 0.0
    %v961 = vsel %vm945, %v759, 0.0
    %v962 = vsel %vm946, %v760, 0.0
    %v963 = vsel %vm947, %v761, 0.0
    %v964 = vsel %vm948, %v762, 0.0
    %v965 = vsel %vm949, %v763, 0.0
    %v966 = vsel %vm950, %v764, 0.0
    %v967 = vsel %vm951, %v765, 0.0
    %v968 = vsel %vm952, %v766, 0.0
    %v969 = vsel %vm953, %v767, 0.0
    %970 = vadd.xlane.f32.xlu0 %v954
    %v971 = vpop.xlane.xlu0 %970
    %972 = vadd.xlane.f32.xlu0 %v955
    %v973 = vpop.xlane.xlu0 %972
    %974 = vadd.xlane.f32.xlu0 %v956
    %v975 = vpop.xlane.xlu0 %974
    %976 = vadd.xlane.f32.xlu0 %v957
    %v977 = vpop.xlane.xlu0 %976
    %978 = vadd.xlane.f32.xlu0 %v958
    %v979 = vpop.xlane.xlu0 %978
    %980 = vadd.xlane.f32.xlu0 %v959
    %v981 = vpop.xlane.xlu0 %980
    %982 = vadd.xlane.f32.xlu0 %v960
    %v983 = vpop.xlane.xlu0 %982
    %984 = vadd.xlane.f32.xlu0 %v961
    %v985 = vpop.xlane.xlu0 %984
    %986 = vadd.xlane.f32.xlu0 %v962
    %v987 = vpop.xlane.xlu0 %986
    %988 = vadd.xlane.f32.xlu0 %v963
    %v989 = vpop.xlane.xlu0 %988
    %990 = vadd.xlane.f32.xlu0 %v964
    %v991 = vpop.xlane.xlu0 %990
    %992 = vadd.xlane.f32.xlu0 %v965
    %v993 = vpop.xlane.xlu0 %992
    %994 = vadd.xlane.f32.xlu0 %v966
    %v995 = vpop.xlane.xlu0 %994
    %996 = vadd.xlane.f32.xlu0 %v967
    %v997 = vpop.xlane.xlu0 %996
    %998 = vadd.xlane.f32.xlu0 %v968
    %v999 = vpop.xlane.xlu0 %998
    %1000 = vadd.xlane.f32.xlu0 %v969
    %v1001 = vpop.xlane.xlu0 %1000
    %vm1002 = vcmp.gt.f32.partialorder %v971, 0.0
    %vm1003 = vcmp.gt.f32.partialorder %v973, 0.0
    %vm1004 = vcmp.gt.f32.partialorder %v975, 0.0
    %vm1005 = vcmp.gt.f32.partialorder %v977, 0.0
    %vm1006 = vcmp.gt.f32.partialorder %v979, 0.0
    %vm1007 = vcmp.gt.f32.partialorder %v981, 0.0
    %vm1008 = vcmp.gt.f32.partialorder %v983, 0.0
    %vm1009 = vcmp.gt.f32.partialorder %v985, 0.0
    %vm1010 = vcmp.gt.f32.partialorder %v987, 0.0
    %vm1011 = vcmp.gt.f32.partialorder %v989, 0.0
    %vm1012 = vcmp.gt.f32.partialorder %v991, 0.0
    %vm1013 = vcmp.gt.f32.partialorder %v993, 0.0
    %vm1014 = vcmp.gt.f32.partialorder %v995, 0.0
    %vm1015 = vcmp.gt.f32.partialorder %v997, 0.0
    %vm1016 = vcmp.gt.f32.partialorder %v999, 0.0
    %vm1017 = vcmp.gt.f32.partialorder %v1001, 0.0
    %v1018 = vrsqrt.pop %v971
    %v1019 = vrsqrt.pop %v973
    %v1020 = vrsqrt.pop %v975
    %v1021 = vrsqrt.pop %v977
    %v1022 = vrsqrt.pop %v979
    %v1023 = vrsqrt.pop %v981
    %v1024 = vrsqrt.pop %v983
    %v1025 = vrsqrt.pop %v985
    %v1026 = vrsqrt.pop %v987
    %v1027 = vrsqrt.pop %v989
    %v1028 = vrsqrt.pop %v991
    %v1029 = vrsqrt.pop %v993
    %v1030 = vrsqrt.pop %v995
    %v1031 = vrsqrt.pop %v997
    %v1032 = vrsqrt.pop %v999
    %v1033 = vrsqrt.pop %v1001
    %v1034 = vsel %vm1002, %v1018, 0.0
    %v1035 = vsel %vm1003, %v1019, 0.0
    %v1036 = vsel %vm1004, %v1020, 0.0
    %v1037 = vsel %vm1005, %v1021, 0.0
    %v1038 = vsel %vm1006, %v1022, 0.0
    %v1039 = vsel %vm1007, %v1023, 0.0
    %v1040 = vsel %vm1008, %v1024, 0.0
    %v1041 = vsel %vm1009, %v1025, 0.0
    %v1042 = vsel %vm1010, %v1026, 0.0
    %v1043 = vsel %vm1011, %v1027, 0.0
    %v1044 = vsel %vm1012, %v1028, 0.0
    %v1045 = vsel %vm1013, %v1029, 0.0
    %v1046 = vsel %vm1014, %v1030, 0.0
    %v1047 = vsel %vm1015, %v1031, 0.0
    %v1048 = vsel %vm1016, %v1032, 0.0
    %v1049 = vsel %vm1017, %v1033, 0.0
    %vm1050 = vcmask 7168
    %1051 = vst.msk [vmem:[%s7] sm:$0xff] %vm1050, %v1034
    %1052 = vst.msk [vmem:[%s7 + $0x8] sm:$0xff] %vm1050, %v1035
    %1053 = vst.msk [vmem:[%s7 + $0x10] sm:$0xff] %vm1050, %v1036
    %1054 = vst.msk [vmem:[%s7 + $0x18] sm:$0xff] %vm1050, %v1037
    %1055 = vst.msk [vmem:[%s7 + $0x20] sm:$0xff] %vm1050, %v1038
    %1056 = vst.msk [vmem:[%s7 + $0x28] sm:$0xff] %vm1050, %v1039
    %1057 = vst.msk [vmem:[%s7 + $0x30] sm:$0xff] %vm1050, %v1040
    %1058 = vst.msk [vmem:[%s7 + $0x38] sm:$0xff] %vm1050, %v1041
    %1059 = vst.msk [vmem:[%s7 + $0x40] sm:$0xff] %vm1050, %v1042
    %1060 = vst.msk [vmem:[%s7 + $0x48] sm:$0xff] %vm1050, %v1043
    %1061 = vst.msk [vmem:[%s7 + $0x50] sm:$0xff] %vm1050, %v1044
    %1062 = vst.msk [vmem:[%s7 + $0x58] sm:$0xff] %vm1050, %v1045
    %1063 = vst.msk [vmem:[%s7 + $0x60] sm:$0xff] %vm1050, %v1046
    %1064 = vst.msk [vmem:[%s7 + $0x68] sm:$0xff] %vm1050, %v1047
    %1065 = vst.msk [vmem:[%s7 + $0x70] sm:$0xff] %vm1050, %v1048
    %1066 = vst.msk [vmem:[%s7 + $0x78] sm:$0xff] %vm1050, %v1049
    %v1067 = vmul.f32 %v1034, %v954
    %v1068 = vmul.f32 %v1035, %v955
    %v1069 = vmul.f32 %v1036, %v956
    %v1070 = vmul.f32 %v1037, %v957
    %v1071 = vmul.f32 %v1038, %v958
    %v1072 = vmul.f32 %v1039, %v959
    %v1073 = vmul.f32 %v1040, %v960
    %v1074 = vmul.f32 %v1041, %v961
    %v1075 = vmul.f32 %v1042, %v962
    %v1076 = vmul.f32 %v1043, %v963
    %v1077 = vmul.f32 %v1044, %v964
    %v1078 = vmul.f32 %v1045, %v965
    %v1079 = vmul.f32 %v1046, %v966
    %v1080 = vmul.f32 %v1047, %v967
    %v1081 = vmul.f32 %v1048, %v968
    %v1082 = vmul.f32 %v1049, %v969
    %v1083 = vpack.c.bf16 %v1068, %v1067
    %v1084 = vpack.c.bf16 %v1070, %v1069
    %v1085 = vpack.c.bf16 %v1072, %v1071
    %v1086 = vpack.c.bf16 %v1074, %v1073
    %v1087 = vpack.c.bf16 %v1076, %v1075
    %v1088 = vpack.c.bf16 %v1078, %v1077
    %v1089 = vpack.c.bf16 %v1080, %v1079
    %v1090 = vpack.c.bf16 %v1082, %v1081
    %v1099 = vunpack.c.l.b16 %v1083
    %v1100 = vunpack.c.h.b16 %v1083
    %v1101 = vunpack.c.l.b16 %v1084
    %v1102 = vunpack.c.h.b16 %v1084
    %v1103 = vunpack.c.l.b16 %v1085
    %v1104 = vunpack.c.h.b16 %v1085
    %v1105 = vunpack.c.l.b16 %v1086
    %v1106 = vunpack.c.h.b16 %v1086
    %v1107 = vunpack.c.l.b16 %v1087
    %v1108 = vunpack.c.h.b16 %v1087
    %v1109 = vunpack.c.l.b16 %v1088
    %v1110 = vunpack.c.h.b16 %v1088
    %v1111 = vunpack.c.l.b16 %v1089
    %v1112 = vunpack.c.h.b16 %v1089
    %v1113 = vunpack.c.l.b16 %v1090
    %v1114 = vunpack.c.h.b16 %v1090
    %v1115 = vpack.c.b16 %v1099, %v1099
    %v1116 = vpack.c.b16 %v1100, %v1100
    %v1117 = vpack.c.b16 %v1101, %v1101
    %v1118 = vpack.c.b16 %v1102, %v1102
    %v1119 = vpack.c.b16 %v1103, %v1103
    %v1120 = vpack.c.b16 %v1104, %v1104
    %v1121 = vpack.c.b16 %v1105, %v1105
    %v1122 = vpack.c.b16 %v1106, %v1106
    %v1123 = vpack.c.b16 %v1107, %v1107
    %v1124 = vpack.c.b16 %v1108, %v1108
    %v1125 = vpack.c.b16 %v1109, %v1109
    %v1126 = vpack.c.b16 %v1110, %v1110
    %v1127 = vpack.c.b16 %v1111, %v1111
    %v1128 = vpack.c.b16 %v1112, %v1112
    %v1129 = vpack.c.b16 %v1113, %v1113
    %v1130 = vpack.c.b16 %v1114, %v1114
    %1147 = vst [vmem:[#allocation2] sm:$0xf] %v1115
    %1148 = vst [vmem:[#allocation2 + $0x4] sm:$0xf] %v1116
    %1149 = vst [vmem:[#allocation2 + $0x8] sm:$0xf] %v1117
    %1150 = vst [vmem:[#allocation2 + $0xc] sm:$0xf] %v1118
    %1151 = vst [vmem:[#allocation2 + $0x10] sm:$0xf] %v1119
    %1152 = vst [vmem:[#allocation2 + $0x14] sm:$0xf] %v1120
    %1153 = vst [vmem:[#allocation2 + $0x18] sm:$0xf] %v1121
    %1154 = vst [vmem:[#allocation2 + $0x1c] sm:$0xf] %v1122
    %1155 = vst [vmem:[#allocation2 + $0x20] sm:$0xf] %v1123
    %1156 = vst [vmem:[#allocation2 + $0x24] sm:$0xf] %v1124
    %1157 = vst [vmem:[#allocation2 + $0x28] sm:$0xf] %v1125
    %1158 = vst [vmem:[#allocation2 + $0x2c] sm:$0xf] %v1126
    %1159 = vst [vmem:[#allocation2 + $0x30] sm:$0xf] %v1127
    %1160 = vst [vmem:[#allocation2 + $0x34] sm:$0xf] %v1128
    %1161 = vst [vmem:[#allocation2 + $0x38] sm:$0xf] %v1129
    %1162 = vst [vmem:[#allocation2 + $0x3c] sm:$0xf] %v1130
    // Predicated region
    $region26: #{tpu_custom_call.1} parent=1 // pred_check
      _
    $region27: #{tpu_custom_call.1} parent=1 // pred_check_branch
      %1164 = sbr.rel (0) target = $region29
    $region28: #{tpu_custom_call.1} parent=1 // pred_region
      %s1166 = ssub.s32 1024, 1024
      %1167 = vsyncadd [#allocation3], %s1166
      %s1168 = sshll.u32 [#allocation2], 4
      %s1169 = int_to_ptr.vmem [resolvable:$true] %s1168
      %1174 = dma.vmem_to_hbm [thread:$0]  %s1169, 1024, %s6, [#allocation3], 64, 64, 4
    $region29: #{tpu_custom_call.1} parent=1 // pred_fallthru
      _
    // Predicated region
    $region30: #{tpu_custom_call.1} parent=1 // pred_check
      _
    $region31: #{tpu_custom_call.1} parent=1 // pred_check_branch
      %1176 = sbr.rel (0) target = $region33
    $region32: #{tpu_custom_call.1} parent=1 // pred_region
      _
    $region33: #{tpu_custom_call.1} parent=1 // pred_fallthru
      _
    // Predicated region
    $region34: #{tpu_custom_call.1} parent=1 // pred_check
      _
    $region35: #{tpu_custom_call.1} parent=1 // pred_check_branch
      %1178 = sbr.rel (0) target = $region37
    $region36: #{tpu_custom_call.1} parent=1 // pred_region
      %1179 = dma.done [#allocation3], 1024
    $region37: #{tpu_custom_call.1} parent=1 // pred_fallthru
      _
    // Predicated region
    $region38: #{tpu_custom_call.1} parent=1 // pred_check
      _
    $region39: #{tpu_custom_call.1} parent=1 // pred_check_branch
      %1181 = sbr.rel (0) target = $region41
    $region40: #{tpu_custom_call.1} parent=1 // pred_region
      _
    $region41: #{tpu_custom_call.1} parent=1 // pred_fallthru
      _
    %1182 = vsyncpa [#allocation3], 1

</llo_original>
